<compile_context>
chip_gen: v7x
topology: tpu7x:2x2x1
jax: 0.10.0
libtpu: 0.0.40
codegen_flags: <defaults>
</compile_context>

<pallas_src>
import jax
import jax.numpy as jnp
from jax.experimental import pallas as pl
from jax.experimental.pallas import tpu as pltpu

EPS = 1e-5


def _round_up(x, m):
    return (x + m - 1) // m * m


def _pick_b_blk(N, TV, Cp, Cop, K):
    """Samples per grid step: amortize per-step overhead, keep VMEM modest,
    keep >= 2 grid steps so a parallel grid axis can feed both v7x TensorCores."""
    # rough per-sample VMEM footprint: double-buffered x/out blocks + K shifted
    # tap copies + the matmul result, all f32.
    per_sample = (2 * Cp + 2 * Cop + K * Cp + Cop) * TV * 4
    cap = max(1, (8 << 20) // per_sample)      # keep per-step footprint ~<= 8 MiB
    cap = min(cap, 256)                        # amortize ~0.35us/step grid overhead
    if N >= 2:
        cap = min(cap, -(-N // 2))             # >= 2 grid steps (v7x megacore)
    return max(1, min(cap, N))


def _make_temporal_conv_kernel(T, V, Cp, Cop, K, dilation, pad, b_blk):
    TV = T * V
    Lb = b_blk * TV
    # lane offset of tap k (time offset (k*dilation - pad), in lanes)
    offs = [(k * dilation - pad) * V for k in range(K)]

    def kernel(x_ref, w_ref, b_ref, o_ref):
        x = x_ref[0]                                                 # (Cp, Lb)
        # per-lane (t*V + v) index inside each sample; hoisted once per step.
        tv = jax.lax.broadcasted_iota(jnp.int32, (Cp, Lb), 1) % TV

        def tap(off):
            # out[:, L] = x[:, L + off] where the source time step stays inside
            # [0, T) of the SAME sample; zero elsewhere (covers both the conv's
            # zero padding and cross-sample leakage of the lane-batched layout).
            if off == 0:
                return x
            zeros = jnp.zeros((Cp, abs(off)), x.dtype)
            if off > 0:
                y = jnp.concatenate([x[:, off:], zeros], axis=1)
            else:
                y = jnp.concatenate([zeros, x[:, :off]], axis=1)
            valid = jnp.logical_and(tv + off >= 0, tv + off < TV)
            return jnp.where(valid, y, 0.0)

        stacked = jnp.concatenate([tap(o) for o in offs], axis=0)   # (K*Cp, Lb)
        out = jnp.dot(w_ref[...], stacked,
                      preferred_element_type=jnp.float32)           # (Cop, Lb)
        o_ref[0] = out + b_ref[...]                                  # one lane-dense store

    return kernel


def temporal_conv_forward(x, conv_w, conv_b, bn_gamma, bn_beta, bn_mean, bn_var,
                          *, stride=1, dilation=1, b_blk=None):
    """TemporalConv forward: Conv2d((K,1), pad, stride, dilation) + BatchNorm2d."""
    N, Cin, T, V = x.shape
    Cout, Cin_w, K, kw = conv_w.shape
    assert Cin_w == Cin and kw == 1
    pad = (K + (K - 1) * (dilation - 1) - 1) // 2
    assert pad < T, "temporal receptive field must fit inside T"
    TV = T * V

    Cp = _round_up(Cin, 8)             # sublane-aligned input channels
    Cop = _round_up(Cout, 8)           # sublane-aligned output channels

    if b_blk is None:
        b_blk = _pick_b_blk(N, TV, Cp, Cop, K)
    num_blocks = pl.cdiv(N, b_blk)
    Np = num_blocks * b_blk
    Lb = b_blk * TV

    # ---- host-side packing (one-time) -------------------------------------
    # fold inference-mode BN into the conv
    s = bn_gamma / jnp.sqrt(bn_var + EPS)
    w_f = conv_w[..., 0].astype(jnp.float32) * s[:, None, None]     # (Cout, Cin, K)
    b_f = (conv_b - bn_mean) * s + bn_beta                          # (Cout,)

    # packed weight: (Cout_pad, K*Cin_pad); column ordering [tap k][in channel c]
    w3 = jnp.zeros((Cop, K, Cp), jnp.float32)
    w3 = w3.at[:Cout, :, :Cin].set(jnp.transpose(w_f, (0, 2, 1)))
    w_pack = w3.reshape(Cop, K * Cp)
    b_pack = jnp.zeros((Cop, 1), jnp.float32).at[:Cout, 0].set(b_f)

    # sample-batched, transposed input: (num_blocks, Cin_pad, b_blk*T*V),
    # lane index = (sample-in-block)*T*V + t*V + v
    xp = jnp.zeros((Np, Cp, TV), jnp.float32)
    xp = xp.at[:N, :Cin].set(x.reshape(N, Cin, TV).astype(jnp.float32))
    xk = (xp.reshape(num_blocks, b_blk, Cp, TV)
            .transpose(0, 2, 1, 3)
            .reshape(num_blocks, Cp, Lb))

    kernel = _make_temporal_conv_kernel(T, V, Cp, Cop, K, dilation, pad, b_blk)
    out = pl.pallas_call(
        kernel,
        out_shape=jax.ShapeDtypeStruct((num_blocks, Cop, Lb), jnp.float32),
        grid=(num_blocks,),
        in_specs=[
            pl.BlockSpec((1, Cp, Lb), lambda b: (b, 0, 0)),      # x block (lane-batched)
            pl.BlockSpec((Cop, K * Cp), lambda b: (0, 0)),       # packed weight (resident)
            pl.BlockSpec((Cop, 1), lambda b: (0, 0)),            # packed bias (resident)
        ],
        out_specs=pl.BlockSpec((1, Cop, Lb), lambda b: (b, 0, 0)),
        compiler_params=pltpu.CompilerParams(
            dimension_semantics=("parallel",),
            vmem_limit_bytes=32 * 1024 * 1024),
    )(xk, w_pack, b_pack)

    # ---- host-side unpacking ------------------------------------------------
    o = (out.reshape(num_blocks, Cop, b_blk, T, V)
            .transpose(0, 2, 1, 3, 4)
            .reshape(Np, Cop, T, V))[:N, :Cout]
    # the kernel produces the stride-1 conv at every input time step; PyTorch's
    # stride / output-length semantics are a static slice of it.
    t_out_s1 = T + 2 * pad - dilation * (K - 1)
    return o[:, :, :t_out_s1:stride]


def reference_forward(x, conv_w, conv_b, bn_gamma, bn_beta, bn_mean, bn_var,
                      *, stride=1, dilation=1):
    """Pure-JAX reference of the same (inference-mode) forward pass."""
    K = conv_w.shape[2]
    pad = (K + (K - 1) * (dilation - 1) - 1) // 2
    y = jax.lax.conv_general_dilated(
        x.astype(jnp.float32), conv_w.astype(jnp.float32),
        window_strides=(stride, 1),
        padding=((pad, pad), (0, 0)),
        rhs_dilation=(dilation, 1),
        dimension_numbers=("NCHW", "OIHW", "NCHW"))
    y = y + conv_b[None, :, None, None]
    s = bn_gamma / jnp.sqrt(bn_var + EPS)
    return y * s[None, :, None, None] + (bn_beta - bn_mean * s)[None, :, None, None]


if __name__ == "__main__":
    # small shapes consistent with the module: x is (N, C_in, T, V); T*V = 128
    N, Cin, Cout = 8, 4, 16
    T, V = 16, 8
    K = 3

    key = jax.random.PRNGKey(0)
    ks = jax.random.split(key, 7)
    x = jax.random.normal(ks[0], (N, Cin, T, V), jnp.float32)
    conv_w = 0.1 * jax.random.normal(ks[1], (Cout, Cin, K, 1), jnp.float32)
    conv_b = 0.1 * jax.random.normal(ks[2], (Cout,), jnp.float32)
    bn_gamma = jax.random.uniform(ks[3], (Cout,), jnp.float32, 0.5, 1.5)
    bn_beta = 0.1 * jax.random.normal(ks[4], (Cout,), jnp.float32)
    bn_mean = 0.1 * jax.random.normal(ks[5], (Cout,), jnp.float32)
    bn_var = jax.random.uniform(ks[6], (Cout,), jnp.float32, 0.5, 1.5)

    for stride, dilation in ((1, 2), (2, 1)):
        out = temporal_conv_forward(x, conv_w, conv_b, bn_gamma, bn_beta,
                                    bn_mean, bn_var, stride=stride, dilation=dilation)
        out = jax.block_until_ready(out)
        ref = reference_forward(x, conv_w, conv_b, bn_gamma, bn_beta,
                                bn_mean, bn_var, stride=stride, dilation=dilation)
        assert out.shape == ref.shape, (out.shape, ref.shape)
        err = float(jnp.max(jnp.abs(out - ref)))
        if not jnp.allclose(out, ref, atol=1e-4, rtol=1e-4):
            raise AssertionError(
                f"mismatch vs reference (stride={stride}, dilation={dilation}), "
                f"max abs diff = {err}")
    print("KERNEL_OK")
</pallas_src>

<mosaic_0001>
module attributes {stable_mosaic.version = 11 : i64} {
  func.func @kernel(%arg0: i32, %arg1: memref<1x8x512xf32, #tpu.memory_space<vmem>>, %arg2: memref<16x24xf32, #tpu.memory_space<vmem>>, %arg3: memref<16x1xf32, #tpu.memory_space<vmem>>, %arg4: memref<1x16x512xf32, #tpu.memory_space<vmem>>) attributes {dimension_semantics = [#tpu.dimension_semantics<parallel>], iteration_bounds = array<i64: 2>, scalar_prefetch = 0 : i64, scratch_operands = 0 : i64, tpu.core_type = #tpu.core_type<tc>, window_params = [{transform_indices = @transform_0, window_bounds = array<i64: 1, 8, 512>}, {pipeline_mode = #tpu.pipeline_mode<synchronous>, transform_indices = @transform_1, window_bounds = array<i64: 16, 24>}, {pipeline_mode = #tpu.pipeline_mode<synchronous>, transform_indices = @transform_2, window_bounds = array<i64: 16, 1>}, {transform_indices = @transform_3, window_bounds = array<i64: 1, 16, 512>}]} {
    %c0 = arith.constant 0 : index
    %c0_0 = arith.constant 0 : index
    %c0_1 = arith.constant 0 : index
    %0 = vector.load %arg1[%c0, %c0_0, %c0_1] : memref<1x8x512xf32, #tpu.memory_space<vmem>>, vector<1x8x512xf32>
    %1 = vector.shape_cast %0 : vector<1x8x512xf32> to vector<8x512xf32>
    %2 = tpu.iota {dimensions = array<i32: 1>} : vector<8x512xi32>
    %c128_i32 = arith.constant 128 : i32
    %c0_i32 = arith.constant 0 : i32
    %3 = arith.cmpi eq, %c128_i32, %c0_i32 : i32
    %c1_i32 = arith.constant 1 : i32
    %4 = arith.select %3, %c1_i32, %c128_i32 : i32
    %5 = vector.broadcast %4 : i32 to vector<8x512xi32>
    %6 = arith.remsi %2, %5 : vector<8x512xi32>
    %c0_i32_2 = arith.constant 0 : i32
    %7 = vector.broadcast %c0_i32_2 : i32 to vector<8x512xi32>
    %8 = arith.cmpi ne, %6, %7 : vector<8x512xi32>
    %c0_i32_3 = arith.constant 0 : i32
    %9 = vector.broadcast %c0_i32_3 : i32 to vector<8x512xi32>
    %10 = arith.cmpi slt, %6, %9 : vector<8x512xi32>
    %c0_i32_4 = arith.constant 0 : i32
    %11 = arith.cmpi slt, %4, %c0_i32_4 : i32
    %12 = vector.broadcast %11 : i1 to vector<8x512xi1>
    %13 = vector.broadcast %12 : vector<8x512xi1> to vector<8x512xi1>
    %14 = arith.xori %10, %13 : vector<8x512xi1>
    %15 = arith.andi %14, %8 : vector<8x512xi1>
    %16 = vector.broadcast %4 : i32 to vector<8x512xi32>
    %17 = arith.addi %6, %16 : vector<8x512xi32>
    %18 = arith.select %15, %17, %6 : vector<8x512xi1>, vector<8x512xi32>
    %cst = arith.constant 0.000000e+00 : f32
    %19 = vector.broadcast %cst : f32 to vector<8x16xf32>
    %20 = vector.extract_strided_slice %1 {offsets = [0, 0], sizes = [8, 496], strides = [1, 1]} : vector<8x512xf32> to vector<8x496xf32>
    %21 = tpu.concatenate %19, %20 in 1 : vector<8x16xf32>, vector<8x496xf32> -> vector<8x512xf32>
    %c-16_i32 = arith.constant -16 : i32
    %22 = vector.broadcast %c-16_i32 : i32 to vector<8x512xi32>
    %23 = arith.addi %18, %22 : vector<8x512xi32>
    %c0_i32_5 = arith.constant 0 : i32
    %24 = vector.broadcast %c0_i32_5 : i32 to vector<8x512xi32>
    %25 = arith.cmpi sge, %23, %24 : vector<8x512xi32>
    %c-16_i32_6 = arith.constant -16 : i32
    %26 = vector.broadcast %c-16_i32_6 : i32 to vector<8x512xi32>
    %27 = arith.addi %18, %26 : vector<8x512xi32>
    %c128_i32_7 = arith.constant 128 : i32
    %28 = vector.broadcast %c128_i32_7 : i32 to vector<8x512xi32>
    %29 = arith.cmpi slt, %27, %28 : vector<8x512xi32>
    %30 = arith.andi %25, %29 : vector<8x512xi1>
    %cst_8 = arith.constant 0.000000e+00 : f32
    %31 = vector.broadcast %cst_8 : f32 to vector<8x512xf32>
    %32 = arith.select %30, %21, %31 : vector<8x512xi1>, vector<8x512xf32>
    %cst_9 = arith.constant 0.000000e+00 : f32
    %33 = vector.broadcast %cst_9 : f32 to vector<8x16xf32>
    %34 = vector.extract_strided_slice %1 {offsets = [0, 16], sizes = [8, 496], strides = [1, 1]} : vector<8x512xf32> to vector<8x496xf32>
    %35 = tpu.concatenate %34, %33 in 1 : vector<8x496xf32>, vector<8x16xf32> -> vector<8x512xf32>
    %c16_i32 = arith.constant 16 : i32
    %36 = vector.broadcast %c16_i32 : i32 to vector<8x512xi32>
    %37 = arith.addi %18, %36 : vector<8x512xi32>
    %c0_i32_10 = arith.constant 0 : i32
    %38 = vector.broadcast %c0_i32_10 : i32 to vector<8x512xi32>
    %39 = arith.cmpi sge, %37, %38 : vector<8x512xi32>
    %c16_i32_11 = arith.constant 16 : i32
    %40 = vector.broadcast %c16_i32_11 : i32 to vector<8x512xi32>
    %41 = arith.addi %18, %40 : vector<8x512xi32>
    %c128_i32_12 = arith.constant 128 : i32
    %42 = vector.broadcast %c128_i32_12 : i32 to vector<8x512xi32>
    %43 = arith.cmpi slt, %41, %42 : vector<8x512xi32>
    %44 = arith.andi %39, %43 : vector<8x512xi1>
    %cst_13 = arith.constant 0.000000e+00 : f32
    %45 = vector.broadcast %cst_13 : f32 to vector<8x512xf32>
    %46 = arith.select %44, %35, %45 : vector<8x512xi1>, vector<8x512xf32>
    %47 = tpu.concatenate %32, %1, %46 in 0 : vector<8x512xf32>, vector<8x512xf32>, vector<8x512xf32> -> vector<24x512xf32>
    %c0_14 = arith.constant 0 : index
    %c0_15 = arith.constant 0 : index
    %48 = vector.load %arg2[%c0_14, %c0_15] : memref<16x24xf32, #tpu.memory_space<vmem>>, vector<16x24xf32>
    %cst_16 = arith.constant dense<0.000000e+00> : vector<16x512xf32>
    %49 = tpu.matmul %48, %47, %cst_16 {dimension_numbers = #tpu.dot_dimension_numbers<[1], [0], [0], [1], [0, 0, 1, 1], [], []>} : vector<16x24xf32>, vector<24x512xf32>, vector<16x512xf32> -> vector<16x512xf32>
    %c0_17 = arith.constant 0 : index
    %c0_18 = arith.constant 0 : index
    %50 = vector.load %arg3[%c0_17, %c0_18] : memref<16x1xf32, #tpu.memory_space<vmem>>, vector<16x1xf32>
    %51 = vector.broadcast %50 : vector<16x1xf32> to vector<16x512xf32>
    %52 = arith.addf %49, %51 : vector<16x512xf32>
    %c0_19 = arith.constant 0 : index
    %c0_20 = arith.constant 0 : index
    %c0_21 = arith.constant 0 : index
    %53 = vector.load %arg4[%c0_19, %c0_20, %c0_21] : memref<1x16x512xf32, #tpu.memory_space<vmem>>, vector<1x16x512xf32>
    %54 = vector.shape_cast %53 : vector<1x16x512xf32> to vector<16x512xf32>
    %55 = vector.shape_cast %52 : vector<16x512xf32> to vector<1x16x512xf32>
    tpu.vector_store %arg4[%c0_19, %c0_20, %c0_21], %55 {strides = array<i32>} : memref<1x16x512xf32, #tpu.memory_space<vmem>>, vector<1x16x512xf32>,
    return
  }
  func.func @transform_0(%arg0: i32) -> (i32, i32, i32) {
    %c0_i32 = arith.constant 0 : i32
    %c0_i32_0 = arith.constant 0 : i32
    %c0_i32_1 = arith.constant 0 : i32
    return %arg0, %c0_i32, %c0_i32_0 : i32, i32, i32
  }
  func.func @transform_1(%arg0: i32) -> (i32, i32) {
    %c0_i32 = arith.constant 0 : i32
    %c0_i32_0 = arith.constant 0 : i32
    %c0_i32_1 = arith.constant 0 : i32
    return %c0_i32, %c0_i32_0 : i32, i32
  }
  func.func @transform_2(%arg0: i32) -> (i32, i32) {
    %c0_i32 = arith.constant 0 : i32
    %c0_i32_0 = arith.constant 0 : i32
    %c0_i32_1 = arith.constant 0 : i32
    return %c0_i32, %c0_i32_0 : i32, i32
  }
  func.func @transform_3(%arg0: i32) -> (i32, i32, i32) {
    %c0_i32 = arith.constant 0 : i32
    %c0_i32_0 = arith.constant 0 : i32
    %c0_i32_1 = arith.constant 0 : i32
    return %arg0, %c0_i32, %c0_i32_0 : i32, i32, i32
  }
}

</mosaic_0001>

<llo_original>
// kernel: tpu_custom_call.1
$region0: #{tpu_custom_call.1}
  #allocation0 [shape = 'u32[]', space=smem, size = 0x4, offset = 0x4, fixed_abs, tag = 'smem constant byte address 0x4 - core index']
  #allocation1 [shape = 'u32[144,128]{1,0:T(1,128)}', space=vmem, size = 0x12000, scoped, tag = 'internal scratch']
  %s0 = inlined_call_operand.hbm [shape: f32[2,8,512], index: 0, kind: input, shape index: {}]
  %s1 = inlined_call_operand.vmem [shape: f32[16,24], index: 1, kind: input, shape index: {}]
  %s2 = inlined_call_operand.vmem [shape: f32[16,1], index: 2, kind: input, shape index: {}]
  %s3 = inlined_call_operand.hbm [shape: f32[2,16,512], index: 3, kind: output, shape index: {}]
  %s4 = sld [smem:[#allocation0]]
  $region49: #{tpu_custom_call.1} parent=0
    _
  %s6 = ssub.s32 1, %s4
  %s7 = scalar_select 0, %s6, %s4
  $region1: #{tpu_custom_call.1} parent=0
    #allocation2 [shape = 'u8[32768]{0}', space=vmem, size = 0x8000, scoped, tag = 'input window, operand 0']
    #allocation3 [shape = 's32[2]{0}', space=sflag, size = 0x8, scoped, tag = 'scoped memory for tpu_custom_call.1']
    #allocation4 [shape = 's32[2]{0}', space=sflag, size = 0x8, scoped, tag = 'scoped memory for tpu_custom_call.1']
    #allocation5 [shape = 'u8[65536]{0}', space=vmem, size = 0x10000, scoped, tag = 'output window, operand 0']
    %8 = vsyncpa [#allocation3], 0
    %s9 = scalar_lea.sflag [#allocation3], 1
    %10 = vsyncpa %s9, 0
    %11 = vsyncpa [#allocation4], 0
    %s12 = scalar_lea.sflag [#allocation4], 1
    %13 = vsyncpa %s12, 0
    loop: start=0, step=1, limit=4
    $region2: #{tpu_custom_call.1} parent=1 // loop_pre_header
      _
    $region3: #{tpu_custom_call.1} parent=1 // loop_header
      %s15 = sphi 0, %s19
      %p16 = scmp.ge.s32.totalorder %s15, 4
      %s25 = sphi 0, %s27
      %s28 = sphi 0, %s25
      %s29 = sphi 0, %s28
      %s45 = sphi 0, %s29
      %s49 = sphi 0, %s49
      %s51 = sphi 0, %s49
      %s52 = sphi 0, %s51
      %s66 = sphi 0, %s52
      %s70 = sphi 0, %s70
      %s72 = sphi 0, %s70
      %s73 = sphi 0, %s72
      %s87 = sphi 0, %s73
      %s93 = sphi 0, %s95
      %s96 = sphi 0, %s93
      %s97 = sphi 0, %s96
      %s113 = sphi 0, %s97
    $region4: #{tpu_custom_call.1} parent=1 // loop_header_branch
      %18 = sbr.rel (%p16) target = $region8
    $region5: #{tpu_custom_call.1} parent=1 // loop_body
      %s20 = ssub.s32 %s15, 1
      %s21 = ssub.s32 %s15, 2
      %s22 = sadd.s32 %s15, 1
      %s23 = ssub.s32 %s15, %s22
      %p24 = scmp.eq.s32.totalorder %s23, 0
      %s26 = sadd.s32 %s25, 1
      %s27 = scalar_select %p24, %s25, %s26
      %p30 = pneg %p24
      %p31 = scmp.eq.s32.totalorder %s15, 1
      %p32 = por %p30, %p31
      %p33 = scmp.ne.s32.totalorder %s25, %s28
      %p34 = scmp.eq.s32.totalorder %s15, 0
      %p35 = por %p33, %p34
      %p36 = scmp.ne.s32.totalorder %s25, %s28
      %p37 = scmp.eq.s32.totalorder %s20, 1
      %p38 = por %p36, %p37
      %p39 = scmp.ne.s32.totalorder %s28, %s29
      %p40 = scmp.eq.s32.totalorder %s20, 0
      %p41 = por %p39, %p40
      %p42 = scmp.ne.s32.totalorder %s28, %s29
      %p43 = scmp.eq.s32.totalorder %s21, 1
      %p44 = por %p42, %p43
      %p46 = scmp.ne.s32.totalorder %s29, %s45
      %p47 = scmp.eq.s32.totalorder %s21, 0
      %p48 = por %p46, %p47
      %s50 = sadd.s32 %s49, 1
      %p53 = scmp.eq.s32.totalorder %s15, 1
      %p54 = scmp.ne.s32.totalorder %s49, %s51
      %p55 = scmp.eq.s32.totalorder %s15, 0
      %p56 = por %p54, %p55
      %p57 = scmp.ne.s32.totalorder %s49, %s51
      %p58 = scmp.eq.s32.totalorder %s20, 1
      %p59 = por %p57, %p58
      %p60 = scmp.ne.s32.totalorder %s51, %s52
      %p61 = scmp.eq.s32.totalorder %s20, 0
      %p62 = por %p60, %p61
      %p63 = scmp.ne.s32.totalorder %s51, %s52
      %p64 = scmp.eq.s32.totalorder %s21, 1
      %p65 = por %p63, %p64
      %p67 = scmp.ne.s32.totalorder %s52, %s66
      %p68 = scmp.eq.s32.totalorder %s21, 0
      %p69 = por %p67, %p68
      %s71 = sadd.s32 %s70, 1
      %p74 = scmp.eq.s32.totalorder %s15, 1
      %p75 = scmp.ne.s32.totalorder %s70, %s72
      %p76 = scmp.eq.s32.totalorder %s15, 0
      %p77 = por %p75, %p76
      %p78 = scmp.ne.s32.totalorder %s70, %s72
      %p79 = scmp.eq.s32.totalorder %s20, 1
      %p80 = por %p78, %p79
      %p81 = scmp.ne.s32.totalorder %s72, %s73
      %p82 = scmp.eq.s32.totalorder %s20, 0
      %p83 = por %p81, %p82
      %p84 = scmp.ne.s32.totalorder %s72, %s73
      %p85 = scmp.eq.s32.totalorder %s21, 1
      %p86 = por %p84, %p85
      %p88 = scmp.ne.s32.totalorder %s73, %s87
      %p89 = scmp.eq.s32.totalorder %s21, 0
      %p90 = por %p88, %p89
      %s91 = ssub.s32 %s15, %s22
      %p92 = scmp.eq.s32.totalorder %s91, 0
      %s94 = sadd.s32 %s93, 1
      %s95 = scalar_select %p92, %s93, %s94
      %p98 = pneg %p92
      %p99 = scmp.eq.s32.totalorder %s15, 1
      %p100 = por %p98, %p99
      %p101 = scmp.ne.s32.totalorder %s93, %s96
      %p102 = scmp.eq.s32.totalorder %s15, 0
      %p103 = por %p101, %p102
      %p104 = scmp.ne.s32.totalorder %s93, %s96
      %p105 = scmp.eq.s32.totalorder %s20, 1
      %p106 = por %p104, %p105
      %p107 = scmp.ne.s32.totalorder %s96, %s97
      %p108 = scmp.eq.s32.totalorder %s20, 0
      %p109 = por %p107, %p108
      %p110 = scmp.ne.s32.totalorder %s96, %s97
      %p111 = scmp.eq.s32.totalorder %s21, 1
      %p112 = por %p110, %p111
      %p114 = scmp.ne.s32.totalorder %s97, %s113
      %p115 = scmp.eq.s32.totalorder %s21, 0
      %p116 = por %p114, %p115
      %p117 = scmp.le.s32.totalorder 1, %s15
      %p118 = scmp.lt.s32.totalorder %s15, 3
      %p119 = pnand %p117, %p118
      %p120 = pneg %p119
      // Predicated region
      $region9: #{tpu_custom_call.1} parent=5 // pred_check
        _
      $region10: #{tpu_custom_call.1} parent=5 // pred_check_branch
        %122 = sbr.rel (%p119) target = $region12
      $region11: #{tpu_custom_call.1} parent=5 // pred_region
        %s123 = ssub.s32 %s15, 1
        // Predicated region
        $region13: #{tpu_custom_call.1} parent=11 // pred_check
          %p124 = pneg %p62
        $region14: #{tpu_custom_call.1} parent=11 // pred_check_branch
          %126 = sbr.rel (%p124) target = $region16
        $region15: #{tpu_custom_call.1} parent=11 // pred_region
          _
        $region16: #{tpu_custom_call.1} parent=11 // pred_fallthru
          _
        // Predicated region
        $region17: #{tpu_custom_call.1} parent=11 // pred_check
          %p127 = pneg %p83
        $region18: #{tpu_custom_call.1} parent=11 // pred_check_branch
          %129 = sbr.rel (%p127) target = $region20
        $region19: #{tpu_custom_call.1} parent=11 // pred_region
          _
        $region20: #{tpu_custom_call.1} parent=11 // pred_fallthru
          _
      $region12: #{tpu_custom_call.1} parent=5 // pred_fallthru
        _
      %p130 = scmp.lt.s32.totalorder %s15, 2
      // Predicated region
      $region21: #{tpu_custom_call.1} parent=5 // pred_check
        %p131 = pneg %p130
      $region22: #{tpu_custom_call.1} parent=5 // pred_check_branch
        %133 = sbr.rel (%p131) target = $region24
      $region23: #{tpu_custom_call.1} parent=5 // pred_region
        // Predicated region
        $region25: #{tpu_custom_call.1} parent=23 // pred_check
          %p134 = pneg %p35
        $region26: #{tpu_custom_call.1} parent=23 // pred_check_branch
          %136 = sbr.rel (%p134) target = $region28
        $region27: #{tpu_custom_call.1} parent=23 // pred_region
          %s137 = sand.u32 %s25, 1
          %s138 = scalar_lea.sflag [#allocation3], %s137
          %s139 = sand.u32 %s25, 1
          %s140 = smul.addr %s139, 32
          %s141 = scalar_lea.vmem [#allocation2], %s140
          %s143 = ssub.s32 512, 512
          %144 = vsyncadd %s138, %s143
          %s145 = smul.addr %s15, 4
          %s146 = smul.addr %s145, 128
          %s147 = scalar_lea.hbm %s0, %s146
          %s149 = sshll.u32 %s141, 4
          %s150 = int_to_ptr.vmem [resolvable:$true] %s149
          %152 = dma.hbm_to_vmem [thread:$0]  %s147, 512, %s150, %s138
        $region28: #{tpu_custom_call.1} parent=23 // pred_fallthru
          _
      $region24: #{tpu_custom_call.1} parent=5 // pred_fallthru
        _
      %p153 = scmp.le.s32.totalorder 1, %s15
      %p154 = scmp.lt.s32.totalorder %s15, 3
      %p155 = pnand %p153, %p154
      %p156 = pneg %p155
      // Predicated region
      $region29: #{tpu_custom_call.1} parent=5 // pred_check
        _
      $region30: #{tpu_custom_call.1} parent=5 // pred_check_branch
        %158 = sbr.rel (%p155) target = $region32
      $region31: #{tpu_custom_call.1} parent=5 // pred_region
        %s159 = ssub.s32 %s15, 1
        %s160 = sand.u32 %s28, 1
        %s161 = scalar_lea.sflag [#allocation3], %s160
        %s162 = sand.u32 %s28, 1
        %s163 = smul.addr %s162, 32
        %s164 = scalar_lea.vmem [#allocation2], %s163
        // Predicated region
        $region33: #{tpu_custom_call.1} parent=31 // pred_check
          %p165 = pneg %p41
        $region34: #{tpu_custom_call.1} parent=31 // pred_check_branch
          %167 = sbr.rel (%p165) target = $region36
        $region35: #{tpu_custom_call.1} parent=31 // pred_region
          %168 = dma.done %s161, 512
        $region36: #{tpu_custom_call.1} parent=31 // pred_fallthru
          _
        %s169 = sand.u32 %s28, 1
        %s170 = scalar_lea.sflag [#allocation3], %s169
        %s171 = sand.u32 %s28, 1
        %s172 = smul.addr %s171, 32
        %s173 = scalar_lea.vmem [#allocation2], %s172
        %p174 = pneg %p41
        %p175 = pneg %p38
        %p176 = pneg %p62
        %p177 = pneg %p59
        %p178 = pneg %p83
        %p179 = pneg %p80
        %p180 = pneg %p109
        %p181 = pneg %p106
        %s182 = sand.u32 %s96, 1
        %s183 = scalar_lea.sflag [#allocation4], %s182
        %s184 = sand.u32 %s96, 1
        %s185 = smul.addr %s184, 64
        %s186 = scalar_lea.vmem [#allocation5], %s185
        %v187 = vld [vmem:[%s164] sm:$0xff]
        %v188 = vld [vmem:[%s164 + $0x8] sm:$0xff]
        %v189 = vld [vmem:[%s164 + $0x10] sm:$0xff]
        %v190 = vld [vmem:[%s164 + $0x18] sm:$0xff]
        %v191 = vlaneseq
        %v192 = vand.u32 %v191, 127
        %v193 = vadd.s32 %v192, 128
        %v194 = vadd.s32 %v192, 256
        %v195 = vadd.s32 %v192, 384
        %vm196 = vcmp.lt.s32.totalorder %v192, 0
        %v197 = vsub.s32 0, %v192
        %v198 = vsel %vm196, %v197, %v192
        %v199 = vshrl.u32 %v198, 7
        %v200 = vand.u32 %v198, 127
        %v201 = vsub.s32 0, %v200
        %v202 = vsel %vm196, %v201, %v200
        %vm203 = vcmp.lt.s32.totalorder %v193, 0
        %v204 = vsub.s32 0, %v193
        %v205 = vsel %vm203, %v204, %v193
        %v206 = vshrl.u32 %v205, 7
        %v207 = vand.u32 %v205, 127
        %v208 = vsub.s32 0, %v207
        %v209 = vsel %vm203, %v208, %v207
        %vm210 = vcmp.lt.s32.totalorder %v194, 0
        %v211 = vsub.s32 0, %v194
        %v212 = vsel %vm210, %v211, %v194
        %v213 = vshrl.u32 %v212, 7
        %v214 = vand.u32 %v212, 127
        %v215 = vsub.s32 0, %v214
        %v216 = vsel %vm210, %v215, %v214
        %vm217 = vcmp.lt.s32.totalorder %v195, 0
        %v218 = vsub.s32 0, %v195
        %v219 = vsel %vm217, %v218, %v195
        %v220 = vshrl.u32 %v219, 7
        %v221 = vand.u32 %v219, 127
        %v222 = vsub.s32 0, %v221
        %v223 = vsel %vm217, %v222, %v221
        %vm224 = vcmp.ne.s32.totalorder %v202, 0
        %vm225 = vcmp.ne.s32.totalorder %v209, 0
        %vm226 = vcmp.ne.s32.totalorder %v216, 0
        %vm227 = vcmp.ne.s32.totalorder %v223, 0
        %vm228 = vcmp.lt.s32.totalorder %v202, 0
        %vm229 = vcmp.lt.s32.totalorder %v209, 0
        %vm230 = vcmp.lt.s32.totalorder %v216, 0
        %vm231 = vcmp.lt.s32.totalorder %v223, 0
        %vm232 = vmand %vm228, %vm224
        %vm233 = vmand %vm229, %vm225
        %vm234 = vmand %vm230, %vm226
        %vm235 = vmand %vm231, %vm227
        %v236 = vadd.s32 %v202, 128
        %v237 = vadd.s32 %v209, 128
        %v238 = vadd.s32 %v216, 128
        %v239 = vadd.s32 %v223, 128
        %v240 = vsel %vm232, %v236, %v202
        %v241 = vsel %vm233, %v237, %v209
        %v242 = vsel %vm234, %v238, %v216
        %v243 = vsel %vm235, %v239, %v223
        %248 = vrot.lane.b32.xlu0 %v187, 16
        %v249 = vpop.permute.xlu0 %248
        %250 = vrot.lane.b32.xlu0 %v188, 16
        %v251 = vpop.permute.xlu0 %250
        %252 = vrot.lane.b32.xlu0 %v189, 16
        %v253 = vpop.permute.xlu0 %252
        %254 = vrot.lane.b32.xlu0 %v190, 16
        %v255 = vpop.permute.xlu0 %254
        %vm256 = vcmask 130048
        %v257 = vsel %vm256, %v249, %v251
        %v258 = vsel %vm256, %v251, %v253
        %v259 = vsel %vm256, %v253, %v255
        %v264 = vsel %vm256, 0.0, %v249
        %v265 = vadd.s32 %v240, 4294967280
        %v266 = vadd.s32 %v241, 4294967280
        %v267 = vadd.s32 %v242, 4294967280
        %v268 = vadd.s32 %v243, 4294967280
        %vm269 = vcmp.ge.s32.totalorder %v265, 0
        %vm270 = vcmp.ge.s32.totalorder %v266, 0
        %vm271 = vcmp.ge.s32.totalorder %v267, 0
        %vm272 = vcmp.ge.s32.totalorder %v268, 0
        %vm273 = vcmp.lt.s32.totalorder %v265, 128
        %vm274 = vcmp.lt.s32.totalorder %v266, 128
        %vm275 = vcmp.lt.s32.totalorder %v267, 128
        %vm276 = vcmp.lt.s32.totalorder %v268, 128
        %vm277 = vmand %vm269, %vm273
        %vm278 = vmand %vm270, %vm274
        %vm279 = vmand %vm271, %vm275
        %vm280 = vmand %vm272, %vm276
        %v281 = vsel %vm277, %v264, 0.0
        %v282 = vsel %vm278, %v257, 0.0
        %v283 = vsel %vm279, %v258, 0.0
        %v284 = vsel %vm280, %v259, 0.0
        %285 = vrot.lane.b32.xlu0 %v187, 112
        %v286 = vpop.permute.xlu0 %285
        %287 = vrot.lane.b32.xlu0 %v188, 112
        %v288 = vpop.permute.xlu0 %287
        %289 = vrot.lane.b32.xlu0 %v189, 112
        %v290 = vpop.permute.xlu0 %289
        %291 = vrot.lane.b32.xlu0 %v190, 112
        %v292 = vpop.permute.xlu0 %291
        %vm293 = vcmask 916480
        %v294 = vsel %vm293, %v286, %v288
        %v295 = vsel %vm293, %v288, %v290
        %v296 = vsel %vm293, %v290, %v292
        %v301 = vsel %vm293, %v292, 0.0
        %v302 = vadd.s32 %v240, 16
        %v303 = vadd.s32 %v241, 16
        %v304 = vadd.s32 %v242, 16
        %v305 = vadd.s32 %v243, 16
        %vm306 = vcmp.ge.s32.totalorder %v302, 0
        %vm307 = vcmp.ge.s32.totalorder %v303, 0
        %vm308 = vcmp.ge.s32.totalorder %v304, 0
        %vm309 = vcmp.ge.s32.totalorder %v305, 0
        %vm310 = vcmp.lt.s32.totalorder %v302, 128
        %vm311 = vcmp.lt.s32.totalorder %v303, 128
        %vm312 = vcmp.lt.s32.totalorder %v304, 128
        %vm313 = vcmp.lt.s32.totalorder %v305, 128
        %vm314 = vmand %vm306, %vm310
        %vm315 = vmand %vm307, %vm311
        %vm316 = vmand %vm308, %vm312
        %vm317 = vmand %vm309, %vm313
        %v318 = vsel %vm314, %v294, 0.0
        %v319 = vsel %vm315, %v295, 0.0
        %v320 = vsel %vm316, %v296, 0.0
        %v321 = vsel %vm317, %v301, 0.0
        %v322 = vld [vmem:[%s1] sm:$0xff]
        %v323 = vld [vmem:[%s1 + $0x8] sm:$0xff]
        %v324 = vld [vmem:[%s2] sm:$0xff]
        %v325 = vld [vmem:[%s2 + $0x8] sm:$0xff]
        %327 = vset.pattern.permute.xlu0 0
        %328 = vperm.xlu0 %327, %v324
        %v329 = vpop.permute.xlu0 %328
        %332 = vset.pattern.permute.xlu0 0
        %333 = vperm.xlu0 %332, %v325
        %v334 = vpop.permute.xlu0 %333
        %vm336 = vcmask 195584
        %v338 = vsel %vm336, %v322, 0
        %v341 = vsel %vm336, %v323, 0
        %343 = vmatprep.subr.mxu0 %v282
        %344 = vmatpush1.msra.mxu0 %v281
        %345 = vmatprep.subr.mxu0 %v188
        %346 = vmatpush1.msra.mxu0 %v187
        %347 = vmatprep.subr.mxu0 %v319
        %348 = vmatpush1.msra.mxu0 %v318
        %349 = vmatprep.subr.mxu0 0.0
        %350 = vmatpush1.msra.mxu0 0.0
        %351 = vmatprep.subr.mxu0 0.0
        %352 = vmatpush1.msra.mxu0 0.0
        %353 = vmatprep.subr.mxu0 0.0
        %354 = vmatpush1.msra.mxu0 0.0
        %355 = vmatprep.subr.mxu0 0.0
        %356 = vmatpush1.msra.mxu0 0.0
        %357 = vmatprep.subr.mxu0 0.0
        %358 = vmatpush1.msra.mxu0 0.0
        %359 = vmatprep.subr.mxu0 0.0
        %360 = vmatpush1.msra.mxu0 0.0
        %361 = vmatprep.subr.mxu0 0.0
        %362 = vmatpush1.msra.mxu0 0.0
        %363 = vmatprep.subr.mxu0 0.0
        %364 = vmatpush1.msra.mxu0 0.0
        %365 = vmatprep.subr.mxu0 0.0
        %366 = vmatpush1.msra.mxu0 0.0
        %367 = vmatprep.subr.mxu0 0.0
        %368 = vmatpush1.msra.mxu0 0.0
        %369 = vmatprep.subr.mxu0 0.0
        %370 = vmatpush1.msra.mxu0 0.0
        %371 = vmatprep.subr.mxu0 0.0
        %372 = vmatpush1.msra.mxu0 0.0
        %373 = vmatprep.subr.mxu0 0.0
        %374 = vmatpush1.msra.mxu0 0.0
        %375 = vmatprep.subr.mxu0 0.0
        %376 = vmatpush1.msra.mxu0 0.0
        %377 = vmatprep.subr.mxu0 0.0
        %378 = vmatpush1.msra.mxu0 0.0
        %379 = vmatprep.subr.mxu0 0.0
        %380 = vmatpush1.msra.mxu0 0.0
        %381 = vmatprep.subr.mxu0 0.0
        %382 = vmatpush1.msra.mxu0 0.0
        %383 = vmatprep.subr.mxu0 0.0
        %384 = vmatpush1.msra.mxu0 0.0
        %385 = vmatprep.subr.mxu0 0.0
        %386 = vmatpush1.msra.mxu0 0.0
        %387 = vmatprep.subr.mxu0 0.0
        %388 = vmatpush1.msra.mxu0 0.0
        %389 = vmatprep.subr.mxu0 0.0
        %390 = vmatpush1.msra.mxu0 0.0
        %391 = vmatprep.subr.mxu0 0.0
        %392 = vmatpush1.msra.mxu0 0.0
        %393 = vmatprep.subr.mxu0 0.0
        %394 = vmatpush1.msra.mxu0 0.0
        %395 = vmatprep.subr.mxu0 0.0
        %396 = vmatpush1.msra.mxu0 0.0
        %397 = vmatprep.subr.mxu0 0.0
        %398 = vmatpush1.msra.mxu0 0.0
        %399 = vmatprep.subr.mxu0 0.0
        %400 = vmatpush1.msra.mxu0 0.0
        %401 = vmatprep.subr.mxu0 0.0
        %402 = vmatpush1.msra.mxu0 0.0
        %403 = vmatprep.subr.mxu0 0.0
        %404 = vmatpush1.msra.mxu0 0.0
        %405 = vmatprep.subr.mxu0 0.0
        %406 = vmatpush1.msra.mxu0 0.0
        %407 = vmatprep.mubr.f32.mxu0 0.0
        %408 = vmatmul.mubr.f32.gmra.mrb[0].mxu0 %v338
        %v409 = vpop.f32.mrb[0].mxu0
        %v410 = vadd.f32 %v329, %v409
        %v411 = vpop.f32.mrb[0].mxu0
        %v412 = vadd.f32 %v329, %v411
        %413 = vmatprep.mubr.f32.mxu0 0.0
        %414 = vmatmul.mubr.f32.gmra.mrb[0].mxu0 %v341
        %v415 = vpop.f32.mrb[0].mxu0
        %v416 = vadd.f32 %v334, %v415
        %v417 = vpop.f32.mrb[0].mxu0
        %v418 = vadd.f32 %v334, %v417
        %419 = vdwg.mxu0
        %420 = vmatprep.subr.mxu0 %v284
        %421 = vmatpush1.msra.mxu0 %v283
        %422 = vmatprep.subr.mxu0 %v190
        %423 = vmatpush1.msra.mxu0 %v189
        %424 = vmatprep.subr.mxu0 %v321
        %425 = vmatpush1.msra.mxu0 %v320
        %426 = vmatprep.subr.mxu0 0.0
        %427 = vmatpush1.msra.mxu0 0.0
        %428 = vmatprep.subr.mxu0 0.0
        %429 = vmatpush1.msra.mxu0 0.0
        %430 = vmatprep.subr.mxu0 0.0
        %431 = vmatpush1.msra.mxu0 0.0
        %432 = vmatprep.subr.mxu0 0.0
        %433 = vmatpush1.msra.mxu0 0.0
        %434 = vmatprep.subr.mxu0 0.0
        %435 = vmatpush1.msra.mxu0 0.0
        %436 = vmatprep.subr.mxu0 0.0
        %437 = vmatpush1.msra.mxu0 0.0
        %438 = vmatprep.subr.mxu0 0.0
        %439 = vmatpush1.msra.mxu0 0.0
        %440 = vmatprep.subr.mxu0 0.0
        %441 = vmatpush1.msra.mxu0 0.0
        %442 = vmatprep.subr.mxu0 0.0
        %443 = vmatpush1.msra.mxu0 0.0
        %444 = vmatprep.subr.mxu0 0.0
        %445 = vmatpush1.msra.mxu0 0.0
        %446 = vmatprep.subr.mxu0 0.0
        %447 = vmatpush1.msra.mxu0 0.0
        %448 = vmatprep.subr.mxu0 0.0
        %449 = vmatpush1.msra.mxu0 0.0
        %450 = vmatprep.subr.mxu0 0.0
        %451 = vmatpush1.msra.mxu0 0.0
        %452 = vmatprep.subr.mxu0 0.0
        %453 = vmatpush1.msra.mxu0 0.0
        %454 = vmatprep.subr.mxu0 0.0
        %455 = vmatpush1.msra.mxu0 0.0
        %456 = vmatprep.subr.mxu0 0.0
        %457 = vmatpush1.msra.mxu0 0.0
        %458 = vmatprep.subr.mxu0 0.0
        %459 = vmatpush1.msra.mxu0 0.0
        %460 = vmatprep.subr.mxu0 0.0
        %461 = vmatpush1.msra.mxu0 0.0
        %462 = vmatprep.subr.mxu0 0.0
        %463 = vmatpush1.msra.mxu0 0.0
        %464 = vmatprep.subr.mxu0 0.0
        %465 = vmatpush1.msra.mxu0 0.0
        %466 = vmatprep.subr.mxu0 0.0
        %467 = vmatpush1.msra.mxu0 0.0
        %468 = vmatprep.subr.mxu0 0.0
        %469 = vmatpush1.msra.mxu0 0.0
        %470 = vmatprep.subr.mxu0 0.0
        %471 = vmatpush1.msra.mxu0 0.0
        %472 = vmatprep.subr.mxu0 0.0
        %473 = vmatpush1.msra.mxu0 0.0
        %474 = vmatprep.subr.mxu0 0.0
        %475 = vmatpush1.msra.mxu0 0.0
        %476 = vmatprep.subr.mxu0 0.0
        %477 = vmatpush1.msra.mxu0 0.0
        %478 = vmatprep.subr.mxu0 0.0
        %479 = vmatpush1.msra.mxu0 0.0
        %480 = vmatprep.subr.mxu0 0.0
        %481 = vmatpush1.msra.mxu0 0.0
        %482 = vmatprep.subr.mxu0 0.0
        %483 = vmatpush1.msra.mxu0 0.0
        %484 = vmatprep.mubr.f32.mxu0 0.0
        %485 = vmatmul.mubr.f32.gmra.mrb[0].mxu0 %v338
        %v486 = vpop.f32.mrb[0].mxu0
        %v487 = vadd.f32 %v329, %v486
        %v488 = vpop.f32.mrb[0].mxu0
        %v489 = vadd.f32 %v329, %v488
        %490 = vmatprep.mubr.f32.mxu0 0.0
        %491 = vmatmul.mubr.f32.gmra.mrb[0].mxu0 %v341
        %v492 = vpop.f32.mrb[0].mxu0
        %v493 = vadd.f32 %v334, %v492
        %v494 = vpop.f32.mrb[0].mxu0
        %v495 = vadd.f32 %v334, %v494
        %496 = vdwg.mxu0
        %497 = vst [vmem:[%s186] sm:$0xff] %v410
        %498 = vst [vmem:[%s186 + $0x8] sm:$0xff] %v412
        %499 = vst [vmem:[%s186 + $0x10] sm:$0xff] %v487
        %500 = vst [vmem:[%s186 + $0x18] sm:$0xff] %v489
        %501 = vst [vmem:[%s186 + $0x20] sm:$0xff] %v416
        %502 = vst [vmem:[%s186 + $0x28] sm:$0xff] %v418
        %503 = vst [vmem:[%s186 + $0x30] sm:$0xff] %v493
        %504 = vst [vmem:[%s186 + $0x38] sm:$0xff] %v495
        %s505 = sand.u32 %s96, 1
        %s506 = scalar_lea.sflag [#allocation4], %s505
        %s507 = sand.u32 %s96, 1
        %s508 = smul.addr %s507, 64
        %s509 = scalar_lea.vmem [#allocation5], %s508
        // Predicated region
        $region37: #{tpu_custom_call.1} parent=31 // pred_check
          %p510 = pneg %p106
        $region38: #{tpu_custom_call.1} parent=31 // pred_check_branch
          %512 = sbr.rel (%p510) target = $region40
        $region39: #{tpu_custom_call.1} parent=31 // pred_region
          %s514 = ssub.s32 1024, 1024
          %515 = vsyncadd %s506, %s514
          %s516 = smul.addr %s20, 8
          %s517 = smul.addr %s516, 128
          %s518 = scalar_lea.hbm %s3, %s517
          %s519 = sshll.u32 %s509, 4
          %s520 = int_to_ptr.vmem [resolvable:$true] %s519
          %525 = dma.vmem_to_hbm [thread:$0]  %s520, 1024, %s518, %s506, 512, 512, 32
        $region40: #{tpu_custom_call.1} parent=31 // pred_fallthru
          _
      $region32: #{tpu_custom_call.1} parent=5 // pred_fallthru
        _
      %p526 = scmp.le.s32.totalorder 2, %s15
      // Predicated region
      $region41: #{tpu_custom_call.1} parent=5 // pred_check
        %p527 = pneg %p526
      $region42: #{tpu_custom_call.1} parent=5 // pred_check_branch
        %529 = sbr.rel (%p527) target = $region44
      $region43: #{tpu_custom_call.1} parent=5 // pred_region
        %s530 = ssub.s32 %s15, 2
        // Predicated region
        $region45: #{tpu_custom_call.1} parent=43 // pred_check
          %p531 = pneg %p112
        $region46: #{tpu_custom_call.1} parent=43 // pred_check_branch
          %533 = sbr.rel (%p531) target = $region48
        $region47: #{tpu_custom_call.1} parent=43 // pred_region
          %s534 = sand.u32 %s97, 1
          %s535 = scalar_lea.sflag [#allocation4], %s534
          %s536 = sand.u32 %s97, 1
          %s537 = smul.addr %s536, 64
          %s538 = scalar_lea.vmem [#allocation5], %s537
          %539 = dma.done %s535, 1024
        $region48: #{tpu_custom_call.1} parent=43 // pred_fallthru
          _
      $region44: #{tpu_custom_call.1} parent=5 // pred_fallthru
        _
    $region6: #{tpu_custom_call.1} parent=1 // loop_footer
      %s19 = sadd.s32 1, %s15
    $region7: #{tpu_custom_call.1} parent=1 // loop_footer_branch
      %14 = sbr.rel target = $region3
    $region8: #{tpu_custom_call.1} parent=1 // loop_exit
      _
    %540 = vsyncpa [#allocation3], 1
    %s541 = scalar_lea.sflag [#allocation3], 1
    %542 = vsyncpa %s541, 1
    %543 = vsyncpa [#allocation4], 1
    %s544 = scalar_lea.sflag [#allocation4], 1
    %545 = vsyncpa %s544, 1

</llo_original>
